<compile_context>
chip_gen: v5e
topology: v5e:2x2
jax: 0.10.0
libtpu: 0.0.40
codegen_flags: <defaults>
</compile_context>

<pallas_src>
import functools

import jax
import jax.numpy as jnp
from jax.experimental import pallas as pl
from jax.experimental.pallas import tpu as pltpu


# ----------------------------------------------------------------------------
# Fused Pallas kernel: user tower + item tower + similarity epilogue
# ----------------------------------------------------------------------------
def _make_fused_kernel(n_layers, compute_dtype):
    cast = compute_dtype != jnp.float32

    def _mlp(x, param_refs):
        h = x
        for layer in range(n_layers):
            w = param_refs[2 * layer][...]
            b = param_refs[2 * layer + 1][...]
            if cast:
                # bf16 MXU operands; accumulation stays f32 (preferred_element_type),
                # bias-add / ReLU stay f32 (cheap on v5e which has no bf16 VPU).
                h = h.astype(compute_dtype)
                w = w.astype(compute_dtype)
            h = jnp.dot(h, w, preferred_element_type=jnp.float32) + b
            if layer != n_layers - 1:
                h = jnp.maximum(h, 0.0)
        return h

    def kernel(*refs):
        user_ref, items_ref = refs[0], refs[1]
        u_params = refs[2:2 + 2 * n_layers]
        i_params = refs[2 + 2 * n_layers:2 + 4 * n_layers]
        out_ref = refs[-1]

        tb, k, d = items_ref.shape

        # Towers (2-D matmuls on the MXU).
        u = _mlp(user_ref[...], u_params)                        # (tb, d_out) f32
        it = _mlp(items_ref[...].reshape(tb * k, d), i_params)   # (tb*k, d_out) f32

        d_out = u.shape[-1]
        u3 = u.reshape(tb, 1, d_out)
        it3 = it.reshape(tb, k, d_out)
        if cast:
            u3 = u3.astype(compute_dtype)
            it3 = it3.astype(compute_dtype)
        # Batched contraction over d_out on the MXU (positive item is column 0).
        sims = jnp.einsum("bqd,bkd->bqk", u3, it3,
                          preferred_element_type=jnp.float32)    # (tb, 1, k)
        out_ref[...] = sims.reshape(tb, k).astype(out_ref.dtype)

    return kernel


def run_two_tower(user_emb, item_emb, user_params, item_params, *,
                  tile_b=128, compute_dtype=jnp.float32):
    """user_emb: (B, D); item_emb: (B, K, D) with positive at column 0 -> (B, K)."""
    B, K, D = item_emb.shape
    n_layers = len(user_params)

    # Tile the batch dimension; pad so the grid divides evenly.
    tile_b = min(tile_b, B)
    pad = (-B) % tile_b
    if pad:
        user_emb = jnp.pad(user_emb, ((0, pad), (0, 0)))
        item_emb = jnp.pad(item_emb, ((0, pad), (0, 0), (0, 0)))
    Bp = B + pad

    u_flat = [p for wb in user_params for p in wb]
    i_flat = [p for wb in item_params for p in wb]
    # Same block index for every grid step -> weights/biases stay VMEM-resident.
    param_specs = [pl.BlockSpec(p.shape, lambda i: (0, 0)) for p in u_flat + i_flat]

    sims = pl.pallas_call(
        _make_fused_kernel(n_layers, compute_dtype),
        out_shape=jax.ShapeDtypeStruct((Bp, K), jnp.float32),
        grid_spec=pltpu.PrefetchScalarGridSpec(
            num_scalar_prefetch=0,
            grid=(Bp // tile_b,),
            in_specs=[pl.BlockSpec((tile_b, D), lambda i: (i, 0)),
                      pl.BlockSpec((tile_b, K, D), lambda i: (i, 0, 0))]
                     + param_specs,
            out_specs=pl.BlockSpec((tile_b, K), lambda i: (i, 0)),
        ),
        compiler_params=pltpu.CompilerParams(
            dimension_semantics=("parallel",)),
    )(user_emb, item_emb, *u_flat, *i_flat)
    return sims[:B]


# ----------------------------------------------------------------------------
# Parameter setup (deterministic, synthetic)
# ----------------------------------------------------------------------------
def init_params(key, n_users, n_items, embd_dim, hidden_mults=(2, 3, 4)):
    dims = [embd_dim] + [embd_dim * h for h in hidden_mults] + [embd_dim]
    n_layers = len(dims) - 1
    keys = iter(jax.random.split(key, 2 + 4 * n_layers))
    params = {
        "user_embedding": jax.random.normal(next(keys), (n_users + 1, embd_dim), jnp.float32),
        "item_embedding": jax.random.normal(next(keys), (n_items + 1, embd_dim), jnp.float32),
        "user_tower": [],
        "item_tower": [],
    }
    for in_ft, out_ft in zip(dims[:-1], dims[1:]):
        bound = float(1.0 / (in_ft ** 0.5))
        for tower in ("user_tower", "item_tower"):
            w = jax.random.uniform(next(keys), (in_ft, out_ft), jnp.float32, -bound, bound)
            b = jax.random.uniform(next(keys), (1, out_ft), jnp.float32, -bound, bound)
            params[tower].append((w, b))
    return params


# ----------------------------------------------------------------------------
# Forward pass (embedding gathers + loss are glue; towers + similarity in Pallas)
# ----------------------------------------------------------------------------
def two_tower_forward(params, user, pos_item, neg_items, labels=None,
                      compute_dtype=jnp.float32):
    # Positive item goes in column 0 (matches torch.cat([pos, neg], dim=-1)).
    item_ids = jnp.concatenate([pos_item[:, None], neg_items], axis=1)  # (B, N+1)

    # Single gather per table (glue).
    # TODO(synk): at production table sizes move these gathers into the kernel
    # via PrefetchScalarGridSpec scalar-prefetched ids + pl.Element row gather.
    user_emb = params["user_embedding"][user]        # (B, D)
    item_emb = params["item_embedding"][item_ids]    # (B, N+1, D)

    similarities = run_two_tower(user_emb, item_emb,
                                 params["user_tower"], params["item_tower"],
                                 compute_dtype=compute_dtype)            # (B, N+1)

    loss = None
    if labels is not None:
        # Cross-entropy over the N+1 candidates (tiny glue).
        logp = jax.nn.log_softmax(similarities, axis=-1)
        loss = -jnp.mean(jnp.take_along_axis(logp, labels.reshape(-1, 1), axis=-1))
    return similarities, loss


# ----------------------------------------------------------------------------
# Pure-JAX reference (for correctness check)
# ----------------------------------------------------------------------------
def reference_forward(params, user, pos_item, neg_items):
    def tower(x, layers):
        for i, (w, b) in enumerate(layers):
            x = x @ w + b[0]
            if i != len(layers) - 1:
                x = jnp.maximum(x, 0.0)
        return x

    B, N = neg_items.shape
    D = params["user_embedding"].shape[1]
    u = tower(params["user_embedding"][user], params["user_tower"])
    p = tower(params["item_embedding"][pos_item], params["item_tower"])
    n = tower(params["item_embedding"][neg_items.reshape(-1)],
              params["item_tower"]).reshape(B, N, D)
    pos_sim = jnp.sum(u * p, axis=-1)
    neg_sim = jnp.sum(u[:, None, :] * n, axis=-1)
    return jnp.concatenate([pos_sim[:, None], neg_sim], axis=-1)


if __name__ == "__main__":
    n_users, n_items = 50, 100
    embd_dim = 32
    B, N = 8, 7  # batch of 8, 7 negatives each -> N+1 = 8 candidates per row

    key = jax.random.PRNGKey(0)
    pkey, ukey, pikey, nkey = jax.random.split(key, 4)

    params = init_params(pkey, n_users, n_items, embd_dim)
    user = jax.random.randint(ukey, (B,), 0, n_users + 1, dtype=jnp.int32)
    pos_item = jax.random.randint(pikey, (B,), 0, n_items + 1, dtype=jnp.int32)
    neg_items = jax.random.randint(nkey, (B, N), 0, n_items + 1, dtype=jnp.int32)
    labels = jnp.zeros((B,), dtype=jnp.int32)  # positive candidate is column 0

    # Full-f32 path (strict check against the pure-JAX reference).
    fwd_f32 = jax.jit(functools.partial(two_tower_forward, compute_dtype=jnp.float32))
    sims, loss = fwd_f32(params, user, pos_item, neg_items, labels)
    sims = jax.block_until_ready(sims)
    loss = jax.block_until_ready(loss)

    ref = reference_forward(params, user, pos_item, neg_items)
    assert sims.shape == (B, N + 1)
    assert bool(jnp.isfinite(loss)), "loss is not finite"
    assert jnp.allclose(sims, ref, rtol=1e-5, atol=1e-4), "Pallas f32 result mismatch"

    # bf16 MXU-operand path (f32 accumulation) recommended for v6e/v7x; loose check.
    fwd_bf16 = jax.jit(functools.partial(two_tower_forward, compute_dtype=jnp.bfloat16))
    sims_bf16, _ = fwd_bf16(params, user, pos_item, neg_items, labels)
    sims_bf16 = jax.block_until_ready(sims_bf16)
    assert sims_bf16.shape == (B, N + 1)
    assert jnp.allclose(sims_bf16, ref, rtol=1e-1, atol=5e-2), "Pallas bf16 result mismatch"

    print("KERNEL_OK")
</pallas_src>

<mosaic_0001>
module attributes {stable_mosaic.version = 11 : i64} {
  func.func @kernel(%arg0: i32, %arg1: memref<8x32xf32, #tpu.memory_space<vmem>>, %arg2: memref<8x8x32xf32, #tpu.memory_space<vmem>>, %arg3: memref<32x64xf32, #tpu.memory_space<vmem>>, %arg4: memref<1x64xf32, #tpu.memory_space<vmem>>, %arg5: memref<64x96xf32, #tpu.memory_space<vmem>>, %arg6: memref<1x96xf32, #tpu.memory_space<vmem>>, %arg7: memref<96x128xf32, #tpu.memory_space<vmem>>, %arg8: memref<1x128xf32, #tpu.memory_space<vmem>>, %arg9: memref<128x32xf32, #tpu.memory_space<vmem>>, %arg10: memref<1x32xf32, #tpu.memory_space<vmem>>, %arg11: memref<32x64xf32, #tpu.memory_space<vmem>>, %arg12: memref<1x64xf32, #tpu.memory_space<vmem>>, %arg13: memref<64x96xf32, #tpu.memory_space<vmem>>, %arg14: memref<1x96xf32, #tpu.memory_space<vmem>>, %arg15: memref<96x128xf32, #tpu.memory_space<vmem>>, %arg16: memref<1x128xf32, #tpu.memory_space<vmem>>, %arg17: memref<128x32xf32, #tpu.memory_space<vmem>>, %arg18: memref<1x32xf32, #tpu.memory_space<vmem>>, %arg19: memref<8x8xf32, #tpu.memory_space<vmem>>) attributes {dimension_semantics = [#tpu.dimension_semantics<parallel>], iteration_bounds = array<i64: 1>, scalar_prefetch = 0 : i64, scratch_operands = 0 : i64, tpu.core_type = #tpu.core_type<tc>, window_params = [{transform_indices = @transform_0, window_bounds = array<i64: 8, 32>}, {transform_indices = @transform_1, window_bounds = array<i64: 8, 8, 32>}, {pipeline_mode = #tpu.pipeline_mode<synchronous>, transform_indices = @transform_2, window_bounds = array<i64: 32, 64>}, {pipeline_mode = #tpu.pipeline_mode<synchronous>, transform_indices = @transform_3, window_bounds = array<i64: 1, 64>}, {pipeline_mode = #tpu.pipeline_mode<synchronous>, transform_indices = @transform_4, window_bounds = array<i64: 64, 96>}, {pipeline_mode = #tpu.pipeline_mode<synchronous>, transform_indices = @transform_5, window_bounds = array<i64: 1, 96>}, {pipeline_mode = #tpu.pipeline_mode<synchronous>, transform_indices = @transform_6, window_bounds = array<i64: 96, 128>}, {pipeline_mode = #tpu.pipeline_mode<synchronous>, transform_indices = @transform_7, window_bounds = array<i64: 1, 128>}, {pipeline_mode = #tpu.pipeline_mode<synchronous>, transform_indices = @transform_8, window_bounds = array<i64: 128, 32>}, {pipeline_mode = #tpu.pipeline_mode<synchronous>, transform_indices = @transform_9, window_bounds = array<i64: 1, 32>}, {pipeline_mode = #tpu.pipeline_mode<synchronous>, transform_indices = @transform_10, window_bounds = array<i64: 32, 64>}, {pipeline_mode = #tpu.pipeline_mode<synchronous>, transform_indices = @transform_11, window_bounds = array<i64: 1, 64>}, {pipeline_mode = #tpu.pipeline_mode<synchronous>, transform_indices = @transform_12, window_bounds = array<i64: 64, 96>}, {pipeline_mode = #tpu.pipeline_mode<synchronous>, transform_indices = @transform_13, window_bounds = array<i64: 1, 96>}, {pipeline_mode = #tpu.pipeline_mode<synchronous>, transform_indices = @transform_14, window_bounds = array<i64: 96, 128>}, {pipeline_mode = #tpu.pipeline_mode<synchronous>, transform_indices = @transform_15, window_bounds = array<i64: 1, 128>}, {pipeline_mode = #tpu.pipeline_mode<synchronous>, transform_indices = @transform_16, window_bounds = array<i64: 128, 32>}, {pipeline_mode = #tpu.pipeline_mode<synchronous>, transform_indices = @transform_17, window_bounds = array<i64: 1, 32>}, {transform_indices = @transform_18, window_bounds = array<i64: 8, 8>}]} {
    %c0 = arith.constant 0 : index
    %c0_0 = arith.constant 0 : index
    %0 = vector.load %arg1[%c0, %c0_0] : memref<8x32xf32, #tpu.memory_space<vmem>>, vector<8x32xf32>
    %c0_1 = arith.constant 0 : index
    %c0_2 = arith.constant 0 : index
    %1 = vector.load %arg3[%c0_1, %c0_2] : memref<32x64xf32, #tpu.memory_space<vmem>>, vector<32x64xf32>
    %c0_3 = arith.constant 0 : index
    %c0_4 = arith.constant 0 : index
    %2 = vector.load %arg4[%c0_3, %c0_4] : memref<1x64xf32, #tpu.memory_space<vmem>>, vector<1x64xf32>
    %cst = arith.constant dense<0.000000e+00> : vector<8x64xf32>
    %3 = tpu.matmul %0, %1, %cst {dimension_numbers = #tpu.dot_dimension_numbers<[1], [0], [0], [1], [0, 0, 1, 1], [], []>} : vector<8x32xf32>, vector<32x64xf32>, vector<8x64xf32> -> vector<8x64xf32>
    %4 = vector.broadcast %2 : vector<1x64xf32> to vector<8x64xf32>
    %5 = arith.addf %3, %4 : vector<8x64xf32>
    %cst_5 = arith.constant 0.000000e+00 : f32
    %6 = vector.broadcast %cst_5 : f32 to vector<8x64xf32>
    %7 = arith.maximumf %5, %6 : vector<8x64xf32>
    %c0_6 = arith.constant 0 : index
    %c0_7 = arith.constant 0 : index
    %8 = vector.load %arg5[%c0_6, %c0_7] : memref<64x96xf32, #tpu.memory_space<vmem>>, vector<64x96xf32>
    %c0_8 = arith.constant 0 : index
    %c0_9 = arith.constant 0 : index
    %9 = vector.load %arg6[%c0_8, %c0_9] : memref<1x96xf32, #tpu.memory_space<vmem>>, vector<1x96xf32>
    %cst_10 = arith.constant dense<0.000000e+00> : vector<8x96xf32>
    %10 = tpu.matmul %7, %8, %cst_10 {dimension_numbers = #tpu.dot_dimension_numbers<[1], [0], [0], [1], [0, 0, 1, 1], [], []>} : vector<8x64xf32>, vector<64x96xf32>, vector<8x96xf32> -> vector<8x96xf32>
    %11 = vector.broadcast %9 : vector<1x96xf32> to vector<8x96xf32>
    %12 = arith.addf %10, %11 : vector<8x96xf32>
    %cst_11 = arith.constant 0.000000e+00 : f32
    %13 = vector.broadcast %cst_11 : f32 to vector<8x96xf32>
    %14 = arith.maximumf %12, %13 : vector<8x96xf32>
    %c0_12 = arith.constant 0 : index
    %c0_13 = arith.constant 0 : index
    %15 = vector.load %arg7[%c0_12, %c0_13] : memref<96x128xf32, #tpu.memory_space<vmem>>, vector<96x128xf32>
    %c0_14 = arith.constant 0 : index
    %c0_15 = arith.constant 0 : index
    %16 = vector.load %arg8[%c0_14, %c0_15] : memref<1x128xf32, #tpu.memory_space<vmem>>, vector<1x128xf32>
    %cst_16 = arith.constant dense<0.000000e+00> : vector<8x128xf32>
    %17 = tpu.matmul %14, %15, %cst_16 {dimension_numbers = #tpu.dot_dimension_numbers<[1], [0], [0], [1], [0, 0, 1, 1], [], []>} : vector<8x96xf32>, vector<96x128xf32>, vector<8x128xf32> -> vector<8x128xf32>
    %18 = vector.broadcast %16 : vector<1x128xf32> to vector<8x128xf32>
    %19 = arith.addf %17, %18 : vector<8x128xf32>
    %cst_17 = arith.constant 0.000000e+00 : f32
    %20 = vector.broadcast %cst_17 : f32 to vector<8x128xf32>
    %21 = arith.maximumf %19, %20 : vector<8x128xf32>
    %c0_18 = arith.constant 0 : index
    %c0_19 = arith.constant 0 : index
    %22 = vector.load %arg9[%c0_18, %c0_19] : memref<128x32xf32, #tpu.memory_space<vmem>>, vector<128x32xf32>
    %c0_20 = arith.constant 0 : index
    %c0_21 = arith.constant 0 : index
    %23 = vector.load %arg10[%c0_20, %c0_21] : memref<1x32xf32, #tpu.memory_space<vmem>>, vector<1x32xf32>
    %cst_22 = arith.constant dense<0.000000e+00> : vector<8x32xf32>
    %24 = tpu.matmul %21, %22, %cst_22 {dimension_numbers = #tpu.dot_dimension_numbers<[1], [0], [0], [1], [0, 0, 1, 1], [], []>} : vector<8x128xf32>, vector<128x32xf32>, vector<8x32xf32> -> vector<8x32xf32>
    %25 = vector.broadcast %23 : vector<1x32xf32> to vector<8x32xf32>
    %26 = arith.addf %24, %25 : vector<8x32xf32>
    %c0_23 = arith.constant 0 : index
    %c0_24 = arith.constant 0 : index
    %c0_25 = arith.constant 0 : index
    %27 = vector.load %arg2[%c0_23, %c0_24, %c0_25] : memref<8x8x32xf32, #tpu.memory_space<vmem>>, vector<8x8x32xf32>
    %28 = vector.shape_cast %27 : vector<8x8x32xf32> to vector<64x32xf32>
    %c0_26 = arith.constant 0 : index
    %c0_27 = arith.constant 0 : index
    %29 = vector.load %arg11[%c0_26, %c0_27] : memref<32x64xf32, #tpu.memory_space<vmem>>, vector<32x64xf32>
    %c0_28 = arith.constant 0 : index
    %c0_29 = arith.constant 0 : index
    %30 = vector.load %arg12[%c0_28, %c0_29] : memref<1x64xf32, #tpu.memory_space<vmem>>, vector<1x64xf32>
    %cst_30 = arith.constant dense<0.000000e+00> : vector<64x64xf32>
    %31 = tpu.matmul %28, %29, %cst_30 {dimension_numbers = #tpu.dot_dimension_numbers<[1], [0], [0], [1], [0, 0, 1, 1], [], []>} : vector<64x32xf32>, vector<32x64xf32>, vector<64x64xf32> -> vector<64x64xf32>
    %32 = vector.broadcast %30 : vector<1x64xf32> to vector<64x64xf32>
    %33 = arith.addf %31, %32 : vector<64x64xf32>
    %cst_31 = arith.constant 0.000000e+00 : f32
    %34 = vector.broadcast %cst_31 : f32 to vector<64x64xf32>
    %35 = arith.maximumf %33, %34 : vector<64x64xf32>
    %c0_32 = arith.constant 0 : index
    %c0_33 = arith.constant 0 : index
    %36 = vector.load %arg13[%c0_32, %c0_33] : memref<64x96xf32, #tpu.memory_space<vmem>>, vector<64x96xf32>
    %c0_34 = arith.constant 0 : index
    %c0_35 = arith.constant 0 : index
    %37 = vector.load %arg14[%c0_34, %c0_35] : memref<1x96xf32, #tpu.memory_space<vmem>>, vector<1x96xf32>
    %cst_36 = arith.constant dense<0.000000e+00> : vector<64x96xf32>
    %38 = tpu.matmul %35, %36, %cst_36 {dimension_numbers = #tpu.dot_dimension_numbers<[1], [0], [0], [1], [0, 0, 1, 1], [], []>} : vector<64x64xf32>, vector<64x96xf32>, vector<64x96xf32> -> vector<64x96xf32>
    %39 = vector.broadcast %37 : vector<1x96xf32> to vector<64x96xf32>
    %40 = arith.addf %38, %39 : vector<64x96xf32>
    %cst_37 = arith.constant 0.000000e+00 : f32
    %41 = vector.broadcast %cst_37 : f32 to vector<64x96xf32>
    %42 = arith.maximumf %40, %41 : vector<64x96xf32>
    %c0_38 = arith.constant 0 : index
    %c0_39 = arith.constant 0 : index
    %43 = vector.load %arg15[%c0_38, %c0_39] : memref<96x128xf32, #tpu.memory_space<vmem>>, vector<96x128xf32>
    %c0_40 = arith.constant 0 : index
    %c0_41 = arith.constant 0 : index
    %44 = vector.load %arg16[%c0_40, %c0_41] : memref<1x128xf32, #tpu.memory_space<vmem>>, vector<1x128xf32>
    %cst_42 = arith.constant dense<0.000000e+00> : vector<64x128xf32>
    %45 = tpu.matmul %42, %43, %cst_42 {dimension_numbers = #tpu.dot_dimension_numbers<[1], [0], [0], [1], [0, 0, 1, 1], [], []>} : vector<64x96xf32>, vector<96x128xf32>, vector<64x128xf32> -> vector<64x128xf32>
    %46 = vector.broadcast %44 : vector<1x128xf32> to vector<64x128xf32>
    %47 = arith.addf %45, %46 : vector<64x128xf32>
    %cst_43 = arith.constant 0.000000e+00 : f32
    %48 = vector.broadcast %cst_43 : f32 to vector<64x128xf32>
    %49 = arith.maximumf %47, %48 : vector<64x128xf32>
    %c0_44 = arith.constant 0 : index
    %c0_45 = arith.constant 0 : index
    %50 = vector.load %arg17[%c0_44, %c0_45] : memref<128x32xf32, #tpu.memory_space<vmem>>, vector<128x32xf32>
    %c0_46 = arith.constant 0 : index
    %c0_47 = arith.constant 0 : index
    %51 = vector.load %arg18[%c0_46, %c0_47] : memref<1x32xf32, #tpu.memory_space<vmem>>, vector<1x32xf32>
    %cst_48 = arith.constant dense<0.000000e+00> : vector<64x32xf32>
    %52 = tpu.matmul %49, %50, %cst_48 {dimension_numbers = #tpu.dot_dimension_numbers<[1], [0], [0], [1], [0, 0, 1, 1], [], []>} : vector<64x128xf32>, vector<128x32xf32>, vector<64x32xf32> -> vector<64x32xf32>
    %53 = vector.broadcast %51 : vector<1x32xf32> to vector<64x32xf32>
    %54 = arith.addf %52, %53 : vector<64x32xf32>
    %55 = vector.shape_cast %26 : vector<8x32xf32> to vector<8x1x32xf32>
    %56 = vector.shape_cast %54 : vector<64x32xf32> to vector<8x8x32xf32>
    "tpu.trace_start"() <{level = 10 : i32, message = "bqd,bkd->bqk"}> : () -> ()
    %cst_49 = arith.constant dense<0.000000e+00> : vector<8x1x8xf32>
    %57 = tpu.matmul %55, %56, %cst_49 {dimension_numbers = #tpu.dot_dimension_numbers<[2], [2], [1], [1], [0, 0, 0, 1, 1, 1], [0], [0]>} : vector<8x1x32xf32>, vector<8x8x32xf32>, vector<8x1x8xf32> -> vector<8x1x8xf32>
    "tpu.trace_stop"() : () -> ()
    %58 = vector.shape_cast %57 : vector<8x1x8xf32> to vector<8x8xf32>
    %c0_50 = arith.constant 0 : index
    %c0_51 = arith.constant 0 : index
    %59 = vector.load %arg19[%c0_50, %c0_51] : memref<8x8xf32, #tpu.memory_space<vmem>>, vector<8x8xf32>
    tpu.vector_store %arg19[%c0_50, %c0_51], %58 {strides = array<i32>} : memref<8x8xf32, #tpu.memory_space<vmem>>, vector<8x8xf32>,
    return
  }
  func.func @transform_0(%arg0: i32) -> (i32, i32) {
    %c0_i32 = arith.constant 0 : i32
    %c0_i32_0 = arith.constant 0 : i32
    return %arg0, %c0_i32 : i32, i32
  }
  func.func @transform_1(%arg0: i32) -> (i32, i32, i32) {
    %c0_i32 = arith.constant 0 : i32
    %c0_i32_0 = arith.constant 0 : i32
    %c0_i32_1 = arith.constant 0 : i32
    return %arg0, %c0_i32, %c0_i32_0 : i32, i32, i32
  }
  func.func @transform_2(%arg0: i32) -> (i32, i32) {
    %c0_i32 = arith.constant 0 : i32
    %c0_i32_0 = arith.constant 0 : i32
    %c0_i32_1 = arith.constant 0 : i32
    return %c0_i32, %c0_i32_0 : i32, i32
  }
  func.func @transform_3(%arg0: i32) -> (i32, i32) {
    %c0_i32 = arith.constant 0 : i32
    %c0_i32_0 = arith.constant 0 : i32
    %c0_i32_1 = arith.constant 0 : i32
    return %c0_i32, %c0_i32_0 : i32, i32
  }
  func.func @transform_4(%arg0: i32) -> (i32, i32) {
    %c0_i32 = arith.constant 0 : i32
    %c0_i32_0 = arith.constant 0 : i32
    %c0_i32_1 = arith.constant 0 : i32
    return %c0_i32, %c0_i32_0 : i32, i32
  }
  func.func @transform_5(%arg0: i32) -> (i32, i32) {
    %c0_i32 = arith.constant 0 : i32
    %c0_i32_0 = arith.constant 0 : i32
    %c0_i32_1 = arith.constant 0 : i32
    return %c0_i32, %c0_i32_0 : i32, i32
  }
  func.func @transform_6(%arg0: i32) -> (i32, i32) {
    %c0_i32 = arith.constant 0 : i32
    %c0_i32_0 = arith.constant 0 : i32
    %c0_i32_1 = arith.constant 0 : i32
    return %c0_i32, %c0_i32_0 : i32, i32
  }
  func.func @transform_7(%arg0: i32) -> (i32, i32) {
    %c0_i32 = arith.constant 0 : i32
    %c0_i32_0 = arith.constant 0 : i32
    %c0_i32_1 = arith.constant 0 : i32
    return %c0_i32, %c0_i32_0 : i32, i32
  }
  func.func @transform_8(%arg0: i32) -> (i32, i32) {
    %c0_i32 = arith.constant 0 : i32
    %c0_i32_0 = arith.constant 0 : i32
    %c0_i32_1 = arith.constant 0 : i32
    return %c0_i32, %c0_i32_0 : i32, i32
  }
  func.func @transform_9(%arg0: i32) -> (i32, i32) {
    %c0_i32 = arith.constant 0 : i32
    %c0_i32_0 = arith.constant 0 : i32
    %c0_i32_1 = arith.constant 0 : i32
    return %c0_i32, %c0_i32_0 : i32, i32
  }
  func.func @transform_10(%arg0: i32) -> (i32, i32) {
    %c0_i32 = arith.constant 0 : i32
    %c0_i32_0 = arith.constant 0 : i32
    %c0_i32_1 = arith.constant 0 : i32
    return %c0_i32, %c0_i32_0 : i32, i32
  }
  func.func @transform_11(%arg0: i32) -> (i32, i32) {
    %c0_i32 = arith.constant 0 : i32
    %c0_i32_0 = arith.constant 0 : i32
    %c0_i32_1 = arith.constant 0 : i32
    return %c0_i32, %c0_i32_0 : i32, i32
  }
  func.func @transform_12(%arg0: i32) -> (i32, i32) {
    %c0_i32 = arith.constant 0 : i32
    %c0_i32_0 = arith.constant 0 : i32
    %c0_i32_1 = arith.constant 0 : i32
    return %c0_i32, %c0_i32_0 : i32, i32
  }
  func.func @transform_13(%arg0: i32) -> (i32, i32) {
    %c0_i32 = arith.constant 0 : i32
    %c0_i32_0 = arith.constant 0 : i32
    %c0_i32_1 = arith.constant 0 : i32
    return %c0_i32, %c0_i32_0 : i32, i32
  }
  func.func @transform_14(%arg0: i32) -> (i32, i32) {
    %c0_i32 = arith.constant 0 : i32
    %c0_i32_0 = arith.constant 0 : i32
    %c0_i32_1 = arith.constant 0 : i32
    return %c0_i32, %c0_i32_0 : i32, i32
  }
  func.func @transform_15(%arg0: i32) -> (i32, i32) {
    %c0_i32 = arith.constant 0 : i32
    %c0_i32_0 = arith.constant 0 : i32
    %c0_i32_1 = arith.constant 0 : i32
    return %c0_i32, %c0_i32_0 : i32, i32
  }
  func.func @transform_16(%arg0: i32) -> (i32, i32) {
    %c0_i32 = arith.constant 0 : i32
    %c0_i32_0 = arith.constant 0 : i32
    %c0_i32_1 = arith.constant 0 : i32
    return %c0_i32, %c0_i32_0 : i32, i32
  }
  func.func @transform_17(%arg0: i32) -> (i32, i32) {
    %c0_i32 = arith.constant 0 : i32
    %c0_i32_0 = arith.constant 0 : i32
    %c0_i32_1 = arith.constant 0 : i32
    return %c0_i32, %c0_i32_0 : i32, i32
  }
  func.func @transform_18(%arg0: i32) -> (i32, i32) {
    %c0_i32 = arith.constant 0 : i32
    %c0_i32_0 = arith.constant 0 : i32
    return %arg0, %c0_i32 : i32, i32
  }
}

</mosaic_0001>

<llo_original>
// kernel: two_tower_forward.1
$region0: #{two_tower_forward.1}
  #allocation0 [shape = 'u32[]', space=smem, size = 0x4, offset = 0x4, fixed_abs, tag = 'smem constant byte address 0x4 - core index']
  #allocation1 [shape = 'u32[72,128]{1,0:T(1,128)}', space=vmem, size = 0x9000, scoped, tag = 'internal scratch']
  %s0 = inlined_call_operand.vmem [shape: f32[8,32], index: 0, kind: input, shape index: {}]
  %s1 = inlined_call_operand.vmem [shape: f32[8,8,32], index: 1, kind: input, shape index: {}]
  %s2 = inlined_call_operand.vmem [shape: f32[32,64], index: 2, kind: input, shape index: {}]
  %s3 = inlined_call_operand.vmem [shape: f32[1,64], index: 3, kind: input, shape index: {}]
  %s4 = inlined_call_operand.vmem [shape: f32[64,96], index: 4, kind: input, shape index: {}]
  %s5 = inlined_call_operand.vmem [shape: f32[1,96], index: 5, kind: input, shape index: {}]
  %s6 = inlined_call_operand.vmem [shape: f32[96,128], index: 6, kind: input, shape index: {}]
  %s7 = inlined_call_operand.vmem [shape: f32[1,128], index: 7, kind: input, shape index: {}]
  %s8 = inlined_call_operand.vmem [shape: f32[128,32], index: 8, kind: input, shape index: {}]
  %s9 = inlined_call_operand.vmem [shape: f32[1,32], index: 9, kind: input, shape index: {}]
  %s10 = inlined_call_operand.vmem [shape: f32[32,64], index: 10, kind: input, shape index: {}]
  %s11 = inlined_call_operand.vmem [shape: f32[1,64], index: 11, kind: input, shape index: {}]
  %s12 = inlined_call_operand.vmem [shape: f32[64,96], index: 12, kind: input, shape index: {}]
  %s13 = inlined_call_operand.vmem [shape: f32[1,96], index: 13, kind: input, shape index: {}]
  %s14 = inlined_call_operand.vmem [shape: f32[96,128], index: 14, kind: input, shape index: {}]
  %s15 = inlined_call_operand.vmem [shape: f32[1,128], index: 15, kind: input, shape index: {}]
  %s16 = inlined_call_operand.vmem [shape: f32[128,32], index: 16, kind: input, shape index: {}]
  %s17 = inlined_call_operand.vmem [shape: f32[1,32], index: 17, kind: input, shape index: {}]
  %s18 = inlined_call_operand.vmem [shape: f32[8,8], index: 18, kind: output, shape index: {}]
  %s19 = sld [smem:[#allocation0]]
  $region82: #{two_tower_forward.1} parent=0
    _
  %s21 = ssub.s32 1, %s19
  %s22 = scalar_select 0, %s21, %s19
  // Predicated region
  $region2: #{two_tower_forward.1} parent=0 // pred_check
    _
  $region3: #{two_tower_forward.1} parent=0 // pred_check_branch
    %24 = sbr.rel (0) target = $region5
  $region4: #{two_tower_forward.1} parent=0 // pred_region
    _
  $region5: #{two_tower_forward.1} parent=0 // pred_fallthru
    _
  // Predicated region
  $region6: #{two_tower_forward.1} parent=0 // pred_check
    _
  $region7: #{two_tower_forward.1} parent=0 // pred_check_branch
    %26 = sbr.rel (0) target = $region9
  $region8: #{two_tower_forward.1} parent=0 // pred_region
    _
  $region9: #{two_tower_forward.1} parent=0 // pred_fallthru
    _
  // Predicated region
  $region10: #{two_tower_forward.1} parent=0 // pred_check
    _
  $region11: #{two_tower_forward.1} parent=0 // pred_check_branch
    %28 = sbr.rel (0) target = $region13
  $region12: #{two_tower_forward.1} parent=0 // pred_region
    _
  $region13: #{two_tower_forward.1} parent=0 // pred_fallthru
    _
  // Predicated region
  $region14: #{two_tower_forward.1} parent=0 // pred_check
    _
  $region15: #{two_tower_forward.1} parent=0 // pred_check_branch
    %30 = sbr.rel (0) target = $region17
  $region16: #{two_tower_forward.1} parent=0 // pred_region
    _
  $region17: #{two_tower_forward.1} parent=0 // pred_fallthru
    _
  // Predicated region
  $region18: #{two_tower_forward.1} parent=0 // pred_check
    _
  $region19: #{two_tower_forward.1} parent=0 // pred_check_branch
    %32 = sbr.rel (0) target = $region21
  $region20: #{two_tower_forward.1} parent=0 // pred_region
    _
  $region21: #{two_tower_forward.1} parent=0 // pred_fallthru
    _
  // Predicated region
  $region22: #{two_tower_forward.1} parent=0 // pred_check
    _
  $region23: #{two_tower_forward.1} parent=0 // pred_check_branch
    %34 = sbr.rel (0) target = $region25
  $region24: #{two_tower_forward.1} parent=0 // pred_region
    _
  $region25: #{two_tower_forward.1} parent=0 // pred_fallthru
    _
  // Predicated region
  $region26: #{two_tower_forward.1} parent=0 // pred_check
    _
  $region27: #{two_tower_forward.1} parent=0 // pred_check_branch
    %36 = sbr.rel (0) target = $region29
  $region28: #{two_tower_forward.1} parent=0 // pred_region
    _
  $region29: #{two_tower_forward.1} parent=0 // pred_fallthru
    _
  // Predicated region
  $region30: #{two_tower_forward.1} parent=0 // pred_check
    _
  $region31: #{two_tower_forward.1} parent=0 // pred_check_branch
    %38 = sbr.rel (0) target = $region33
  $region32: #{two_tower_forward.1} parent=0 // pred_region
    _
  $region33: #{two_tower_forward.1} parent=0 // pred_fallthru
    _
  // Predicated region
  $region34: #{two_tower_forward.1} parent=0 // pred_check
    _
  $region35: #{two_tower_forward.1} parent=0 // pred_check_branch
    %40 = sbr.rel (0) target = $region37
  $region36: #{two_tower_forward.1} parent=0 // pred_region
    _
  $region37: #{two_tower_forward.1} parent=0 // pred_fallthru
    _
  // Predicated region
  $region38: #{two_tower_forward.1} parent=0 // pred_check
    _
  $region39: #{two_tower_forward.1} parent=0 // pred_check_branch
    %42 = sbr.rel (0) target = $region41
  $region40: #{two_tower_forward.1} parent=0 // pred_region
    _
  $region41: #{two_tower_forward.1} parent=0 // pred_fallthru
    _
  // Predicated region
  $region42: #{two_tower_forward.1} parent=0 // pred_check
    _
  $region43: #{two_tower_forward.1} parent=0 // pred_check_branch
    %44 = sbr.rel (0) target = $region45
  $region44: #{two_tower_forward.1} parent=0 // pred_region
    _
  $region45: #{two_tower_forward.1} parent=0 // pred_fallthru
    _
  // Predicated region
  $region46: #{two_tower_forward.1} parent=0 // pred_check
    _
  $region47: #{two_tower_forward.1} parent=0 // pred_check_branch
    %46 = sbr.rel (0) target = $region49
  $region48: #{two_tower_forward.1} parent=0 // pred_region
    _
  $region49: #{two_tower_forward.1} parent=0 // pred_fallthru
    _
  // Predicated region
  $region50: #{two_tower_forward.1} parent=0 // pred_check
    _
  $region51: #{two_tower_forward.1} parent=0 // pred_check_branch
    %48 = sbr.rel (0) target = $region53
  $region52: #{two_tower_forward.1} parent=0 // pred_region
    _
  $region53: #{two_tower_forward.1} parent=0 // pred_fallthru
    _
  // Predicated region
  $region54: #{two_tower_forward.1} parent=0 // pred_check
    _
  $region55: #{two_tower_forward.1} parent=0 // pred_check_branch
    %50 = sbr.rel (0) target = $region57
  $region56: #{two_tower_forward.1} parent=0 // pred_region
    _
  $region57: #{two_tower_forward.1} parent=0 // pred_fallthru
    _
  // Predicated region
  $region58: #{two_tower_forward.1} parent=0 // pred_check
    _
  $region59: #{two_tower_forward.1} parent=0 // pred_check_branch
    %52 = sbr.rel (0) target = $region61
  $region60: #{two_tower_forward.1} parent=0 // pred_region
    _
  $region61: #{two_tower_forward.1} parent=0 // pred_fallthru
    _
  // Predicated region
  $region62: #{two_tower_forward.1} parent=0 // pred_check
    _
  $region63: #{two_tower_forward.1} parent=0 // pred_check_branch
    %54 = sbr.rel (0) target = $region65
  $region64: #{two_tower_forward.1} parent=0 // pred_region
    _
  $region65: #{two_tower_forward.1} parent=0 // pred_fallthru
    _
  // Predicated region
  $region66: #{two_tower_forward.1} parent=0 // pred_check
    _
  $region67: #{two_tower_forward.1} parent=0 // pred_check_branch
    %56 = sbr.rel (0) target = $region69
  $region68: #{two_tower_forward.1} parent=0 // pred_region
    _
  $region69: #{two_tower_forward.1} parent=0 // pred_fallthru
    _
  // Predicated region
  $region70: #{two_tower_forward.1} parent=0 // pred_check
    _
  $region71: #{two_tower_forward.1} parent=0 // pred_check_branch
    %58 = sbr.rel (0) target = $region73
  $region72: #{two_tower_forward.1} parent=0 // pred_region
    _
  $region73: #{two_tower_forward.1} parent=0 // pred_fallthru
    _
  %v59 = vld [vmem:[%s0] sm:$0xff]
  %v60 = vld [vmem:[%s2] sm:$0xff]
  %v61 = vld [vmem:[%s2 + $0x8] sm:$0xff]
  %v62 = vld [vmem:[%s2 + $0x10] sm:$0xff]
  %v63 = vld [vmem:[%s2 + $0x18] sm:$0xff]
  %v64 = vld [vmem:[%s3] sm:$0x1]
  %v66 = vperm.slane %v64, 0
  %vm68 = vcmask 261120
  %v70 = vsel %vm68, %v59, 0
  %72 = vmatpush.msra.mxu0 0.0
  %73 = vmatpush.msra.mxu0 0.0
  %74 = vmatpush.msra.mxu0 0.0
  %75 = vmatpush.msra.mxu0 0.0
  %76 = vmatpush.msra.mxu0 0.0
  %77 = vmatpush.msra.mxu0 0.0
  %78 = vmatpush.msra.mxu0 0.0
  %79 = vmatpush.msra.mxu0 0.0
  %80 = vmatpush.msra.mxu0 0.0
  %81 = vmatpush.msra.mxu0 0.0
  %82 = vmatpush.msra.mxu0 0.0
  %83 = vmatpush.msra.mxu0 0.0
  %84 = vmatpush.msra.mxu0 %v63
  %85 = vmatpush.msra.mxu0 %v62
  %86 = vmatpush.msra.mxu0 %v61
  %87 = vmatpush.msra.mxu0 %v60
  %88 = vmatmul.f32.gmra.mxu0 %v70
  %v89 = vpop.f32.mrf.mxu0
  %v90 = vadd.f32 %v66, %v89
  %91 = vdwg.mxu0
  %v92 = vmax.f32 %v90, 0.0
  %v93 = vld [vmem:[%s4] sm:$0xff]
  %v94 = vld [vmem:[%s4 + $0x8] sm:$0xff]
  %v95 = vld [vmem:[%s4 + $0x10] sm:$0xff]
  %v96 = vld [vmem:[%s4 + $0x18] sm:$0xff]
  %v97 = vld [vmem:[%s4 + $0x20] sm:$0xff]
  %v98 = vld [vmem:[%s4 + $0x28] sm:$0xff]
  %v99 = vld [vmem:[%s4 + $0x30] sm:$0xff]
  %v100 = vld [vmem:[%s4 + $0x38] sm:$0xff]
  %v101 = vld [vmem:[%s5] sm:$0x1]
  %v103 = vperm.slane %v101, 0
  %vm105 = vcmask 523264
  %v107 = vsel %vm105, %v92, 0
  %109 = vmatpush.msra.mxu0 0.0
  %110 = vmatpush.msra.mxu0 0.0
  %111 = vmatpush.msra.mxu0 0.0
  %112 = vmatpush.msra.mxu0 0.0
  %113 = vmatpush.msra.mxu0 0.0
  %114 = vmatpush.msra.mxu0 0.0
  %115 = vmatpush.msra.mxu0 0.0
  %116 = vmatpush.msra.mxu0 0.0
  %117 = vmatpush.msra.mxu0 %v100
  %118 = vmatpush.msra.mxu0 %v99
  %119 = vmatpush.msra.mxu0 %v98
  %120 = vmatpush.msra.mxu0 %v97
  %121 = vmatpush.msra.mxu0 %v96
  %122 = vmatpush.msra.mxu0 %v95
  %123 = vmatpush.msra.mxu0 %v94
  %124 = vmatpush.msra.mxu0 %v93
  %125 = vmatmul.f32.gmra.mxu0 %v107
  %v126 = vpop.f32.mrf.mxu0
  %v127 = vadd.f32 %v103, %v126
  %128 = vdwg.mxu0
  %v129 = vmax.f32 %v127, 0.0
  %v130 = vld [vmem:[%s6] sm:$0xff]
  %v131 = vld [vmem:[%s6 + $0x8] sm:$0xff]
  %v132 = vld [vmem:[%s6 + $0x10] sm:$0xff]
  %v133 = vld [vmem:[%s6 + $0x18] sm:$0xff]
  %v134 = vld [vmem:[%s6 + $0x20] sm:$0xff]
  %v135 = vld [vmem:[%s6 + $0x28] sm:$0xff]
  %v136 = vld [vmem:[%s6 + $0x30] sm:$0xff]
  %v137 = vld [vmem:[%s6 + $0x38] sm:$0xff]
  %v138 = vld [vmem:[%s6 + $0x40] sm:$0xff]
  %v139 = vld [vmem:[%s6 + $0x48] sm:$0xff]
  %v140 = vld [vmem:[%s6 + $0x50] sm:$0xff]
  %v141 = vld [vmem:[%s6 + $0x58] sm:$0xff]
  %v142 = vld [vmem:[%s7] sm:$0x1]
  %v144 = vperm.slane %v142, 0
  %vm146 = vcmask 785408
  %v148 = vsel %vm146, %v129, 0
  %150 = vmatpush.msra.mxu0 0.0
  %151 = vmatpush.msra.mxu0 0.0
  %152 = vmatpush.msra.mxu0 0.0
  %153 = vmatpush.msra.mxu0 0.0
  %154 = vmatpush.msra.mxu0 %v141
  %155 = vmatpush.msra.mxu0 %v140
  %156 = vmatpush.msra.mxu0 %v139
  %157 = vmatpush.msra.mxu0 %v138
  %158 = vmatpush.msra.mxu0 %v137
  %159 = vmatpush.msra.mxu0 %v136
  %160 = vmatpush.msra.mxu0 %v135
  %161 = vmatpush.msra.mxu0 %v134
  %162 = vmatpush.msra.mxu0 %v133
  %163 = vmatpush.msra.mxu0 %v132
  %164 = vmatpush.msra.mxu0 %v131
  %165 = vmatpush.msra.mxu0 %v130
  %166 = vmatmul.f32.gmra.mxu0 %v148
  %v167 = vpop.f32.mrf.mxu0
  %v168 = vadd.f32 %v144, %v167
  %169 = vdwg.mxu0
  %v170 = vmax.f32 %v168, 0.0
  %v171 = vld [vmem:[%s8] sm:$0xff]
  %v172 = vld [vmem:[%s8 + $0x8] sm:$0xff]
  %v173 = vld [vmem:[%s8 + $0x10] sm:$0xff]
  %v174 = vld [vmem:[%s8 + $0x18] sm:$0xff]
  %v175 = vld [vmem:[%s8 + $0x20] sm:$0xff]
  %v176 = vld [vmem:[%s8 + $0x28] sm:$0xff]
  %v177 = vld [vmem:[%s8 + $0x30] sm:$0xff]
  %v178 = vld [vmem:[%s8 + $0x38] sm:$0xff]
  %v179 = vld [vmem:[%s8 + $0x40] sm:$0xff]
  %v180 = vld [vmem:[%s8 + $0x48] sm:$0xff]
  %v181 = vld [vmem:[%s8 + $0x50] sm:$0xff]
  %v182 = vld [vmem:[%s8 + $0x58] sm:$0xff]
  %v183 = vld [vmem:[%s8 + $0x60] sm:$0xff]
  %v184 = vld [vmem:[%s8 + $0x68] sm:$0xff]
  %v185 = vld [vmem:[%s8 + $0x70] sm:$0xff]
  %v186 = vld [vmem:[%s8 + $0x78] sm:$0xff]
  %v187 = vld [vmem:[%s9] sm:$0x1]
  %v189 = vperm.slane %v187, 0
  %191 = vmatpush.msra.mxu0 %v186
  %192 = vmatpush.msra.mxu0 %v185
  %193 = vmatpush.msra.mxu0 %v184
  %194 = vmatpush.msra.mxu0 %v183
  %195 = vmatpush.msra.mxu0 %v182
  %196 = vmatpush.msra.mxu0 %v181
  %197 = vmatpush.msra.mxu0 %v180
  %198 = vmatpush.msra.mxu0 %v179
  %199 = vmatpush.msra.mxu0 %v178
  %200 = vmatpush.msra.mxu0 %v177
  %201 = vmatpush.msra.mxu0 %v176
  %202 = vmatpush.msra.mxu0 %v175
  %203 = vmatpush.msra.mxu0 %v174
  %204 = vmatpush.msra.mxu0 %v173
  %205 = vmatpush.msra.mxu0 %v172
  %206 = vmatpush.msra.mxu0 %v171
  %207 = vmatmul.f32.gmra.mxu0 %v170
  %v208 = vpop.f32.mrf.mxu0
  %v209 = vadd.f32 %v189, %v208
  %210 = vdwg.mxu0
  %v211 = vld [vmem:[%s1] sm:$0xff]
  %v212 = vld [vmem:[%s1 + $0x8] sm:$0xff]
  %v213 = vld [vmem:[%s1 + $0x10] sm:$0xff]
  %v214 = vld [vmem:[%s1 + $0x18] sm:$0xff]
  %v215 = vld [vmem:[%s1 + $0x20] sm:$0xff]
  %v216 = vld [vmem:[%s1 + $0x28] sm:$0xff]
  %v217 = vld [vmem:[%s1 + $0x30] sm:$0xff]
  %v218 = vld [vmem:[%s1 + $0x38] sm:$0xff]
  %v219 = vld [vmem:[%s10] sm:$0xff]
  %v220 = vld [vmem:[%s10 + $0x8] sm:$0xff]
  %v221 = vld [vmem:[%s10 + $0x10] sm:$0xff]
  %v222 = vld [vmem:[%s10 + $0x18] sm:$0xff]
  %v223 = vld [vmem:[%s11] sm:$0x1]
  %v225 = vperm.slane %v223, 0
  %v228 = vsel %vm68, %v211, 0
  %v231 = vsel %vm68, %v212, 0
  %v234 = vsel %vm68, %v213, 0
  %v237 = vsel %vm68, %v214, 0
  %v240 = vsel %vm68, %v215, 0
  %v243 = vsel %vm68, %v216, 0
  %v246 = vsel %vm68, %v217, 0
  %v249 = vsel %vm68, %v218, 0
  %251 = vmatpush.msra.mxu0 0.0
  %252 = vmatpush.msra.mxu0 0.0
  %253 = vmatpush.msra.mxu0 0.0
  %254 = vmatpush.msra.mxu0 0.0
  %255 = vmatpush.msra.mxu0 0.0
  %256 = vmatpush.msra.mxu0 0.0
  %257 = vmatpush.msra.mxu0 0.0
  %258 = vmatpush.msra.mxu0 0.0
  %259 = vmatpush.msra.mxu0 0.0
  %260 = vmatpush.msra.mxu0 0.0
  %261 = vmatpush.msra.mxu0 0.0
  %262 = vmatpush.msra.mxu0 0.0
  %263 = vmatpush.msra.mxu0 %v222
  %264 = vmatpush.msra.mxu0 %v221
  %265 = vmatpush.msra.mxu0 %v220
  %266 = vmatpush.msra.mxu0 %v219
  %267 = vmatmul.f32.gmra.mxu0 %v228
  %v268 = vpop.f32.mrf.mxu0
  %v269 = vadd.f32 %v225, %v268
  %270 = vmatmul.f32.gmra.mxu0 %v231
  %v271 = vpop.f32.mrf.mxu0
  %v272 = vadd.f32 %v225, %v271
  %273 = vmatmul.f32.gmra.mxu0 %v234
  %v274 = vpop.f32.mrf.mxu0
  %v275 = vadd.f32 %v225, %v274
  %276 = vmatmul.f32.gmra.mxu0 %v237
  %v277 = vpop.f32.mrf.mxu0
  %v278 = vadd.f32 %v225, %v277
  %279 = vmatmul.f32.gmra.mxu0 %v240
  %v280 = vpop.f32.mrf.mxu0
  %v281 = vadd.f32 %v225, %v280
  %282 = vmatmul.f32.gmra.mxu0 %v243
  %v283 = vpop.f32.mrf.mxu0
  %v284 = vadd.f32 %v225, %v283
  %285 = vmatmul.f32.gmra.mxu0 %v246
  %v286 = vpop.f32.mrf.mxu0
  %v287 = vadd.f32 %v225, %v286
  %288 = vmatmul.f32.gmra.mxu0 %v249
  %v289 = vpop.f32.mrf.mxu0
  %v290 = vadd.f32 %v225, %v289
  %291 = vdwg.mxu0
  %v292 = vmax.f32 %v269, 0.0
  %v293 = vmax.f32 %v272, 0.0
  %v294 = vmax.f32 %v275, 0.0
  %v295 = vmax.f32 %v278, 0.0
  %v296 = vmax.f32 %v281, 0.0
  %v297 = vmax.f32 %v284, 0.0
  %v298 = vmax.f32 %v287, 0.0
  %v299 = vmax.f32 %v290, 0.0
  %v300 = vld [vmem:[%s12] sm:$0xff]
  %v301 = vld [vmem:[%s12 + $0x8] sm:$0xff]
  %v302 = vld [vmem:[%s12 + $0x10] sm:$0xff]
  %v303 = vld [vmem:[%s12 + $0x18] sm:$0xff]
  %v304 = vld [vmem:[%s12 + $0x20] sm:$0xff]
  %v305 = vld [vmem:[%s12 + $0x28] sm:$0xff]
  %v306 = vld [vmem:[%s12 + $0x30] sm:$0xff]
  %v307 = vld [vmem:[%s12 + $0x38] sm:$0xff]
  %v308 = vld [vmem:[%s13] sm:$0x1]
  %v310 = vperm.slane %v308, 0
  %v313 = vsel %vm105, %v292, 0
  %v316 = vsel %vm105, %v293, 0
  %v319 = vsel %vm105, %v294, 0
  %v322 = vsel %vm105, %v295, 0
  %v325 = vsel %vm105, %v296, 0
  %v328 = vsel %vm105, %v297, 0
  %v331 = vsel %vm105, %v298, 0
  %v334 = vsel %vm105, %v299, 0
  %336 = vmatpush.msra.mxu0 0.0
  %337 = vmatpush.msra.mxu0 0.0
  %338 = vmatpush.msra.mxu0 0.0
  %339 = vmatpush.msra.mxu0 0.0
  %340 = vmatpush.msra.mxu0 0.0
  %341 = vmatpush.msra.mxu0 0.0
  %342 = vmatpush.msra.mxu0 0.0
  %343 = vmatpush.msra.mxu0 0.0
  %344 = vmatpush.msra.mxu0 %v307
  %345 = vmatpush.msra.mxu0 %v306
  %346 = vmatpush.msra.mxu0 %v305
  %347 = vmatpush.msra.mxu0 %v304
  %348 = vmatpush.msra.mxu0 %v303
  %349 = vmatpush.msra.mxu0 %v302
  %350 = vmatpush.msra.mxu0 %v301
  %351 = vmatpush.msra.mxu0 %v300
  %352 = vmatmul.f32.gmra.mxu0 %v313
  %v353 = vpop.f32.mrf.mxu0
  %v354 = vadd.f32 %v310, %v353
  %355 = vmatmul.f32.gmra.mxu0 %v316
  %v356 = vpop.f32.mrf.mxu0
  %v357 = vadd.f32 %v310, %v356
  %358 = vmatmul.f32.gmra.mxu0 %v319
  %v359 = vpop.f32.mrf.mxu0
  %v360 = vadd.f32 %v310, %v359
  %361 = vmatmul.f32.gmra.mxu0 %v322
  %v362 = vpop.f32.mrf.mxu0
  %v363 = vadd.f32 %v310, %v362
  %364 = vmatmul.f32.gmra.mxu0 %v325
  %v365 = vpop.f32.mrf.mxu0
  %v366 = vadd.f32 %v310, %v365
  %367 = vmatmul.f32.gmra.mxu0 %v328
  %v368 = vpop.f32.mrf.mxu0
  %v369 = vadd.f32 %v310, %v368
  %370 = vmatmul.f32.gmra.mxu0 %v331
  %v371 = vpop.f32.mrf.mxu0
  %v372 = vadd.f32 %v310, %v371
  %373 = vmatmul.f32.gmra.mxu0 %v334
  %v374 = vpop.f32.mrf.mxu0
  %v375 = vadd.f32 %v310, %v374
  %376 = vdwg.mxu0
  %v377 = vmax.f32 %v354, 0.0
  %v378 = vmax.f32 %v357, 0.0
  %v379 = vmax.f32 %v360, 0.0
  %v380 = vmax.f32 %v363, 0.0
  %v381 = vmax.f32 %v366, 0.0
  %v382 = vmax.f32 %v369, 0.0
  %v383 = vmax.f32 %v372, 0.0
  %v384 = vmax.f32 %v375, 0.0
  %v385 = vld [vmem:[%s14] sm:$0xff]
  %v386 = vld [vmem:[%s14 + $0x8] sm:$0xff]
  %v387 = vld [vmem:[%s14 + $0x10] sm:$0xff]
  %v388 = vld [vmem:[%s14 + $0x18] sm:$0xff]
  %v389 = vld [vmem:[%s14 + $0x20] sm:$0xff]
  %v390 = vld [vmem:[%s14 + $0x28] sm:$0xff]
  %v391 = vld [vmem:[%s14 + $0x30] sm:$0xff]
  %v392 = vld [vmem:[%s14 + $0x38] sm:$0xff]
  %v393 = vld [vmem:[%s14 + $0x40] sm:$0xff]
  %v394 = vld [vmem:[%s14 + $0x48] sm:$0xff]
  %v395 = vld [vmem:[%s14 + $0x50] sm:$0xff]
  %v396 = vld [vmem:[%s14 + $0x58] sm:$0xff]
  %v397 = vld [vmem:[%s15] sm:$0x1]
  %v399 = vperm.slane %v397, 0
  %v402 = vsel %vm146, %v377, 0
  %v405 = vsel %vm146, %v378, 0
  %v408 = vsel %vm146, %v379, 0
  %v411 = vsel %vm146, %v380, 0
  %v414 = vsel %vm146, %v381, 0
  %v417 = vsel %vm146, %v382, 0
  %v420 = vsel %vm146, %v383, 0
  %v423 = vsel %vm146, %v384, 0
  %425 = vmatpush.msra.mxu0 0.0
  %426 = vmatpush.msra.mxu0 0.0
  %427 = vmatpush.msra.mxu0 0.0
  %428 = vmatpush.msra.mxu0 0.0
  %429 = vmatpush.msra.mxu0 %v396
  %430 = vmatpush.msra.mxu0 %v395
  %431 = vmatpush.msra.mxu0 %v394
  %432 = vmatpush.msra.mxu0 %v393
  %433 = vmatpush.msra.mxu0 %v392
  %434 = vmatpush.msra.mxu0 %v391
  %435 = vmatpush.msra.mxu0 %v390
  %436 = vmatpush.msra.mxu0 %v389
  %437 = vmatpush.msra.mxu0 %v388
  %438 = vmatpush.msra.mxu0 %v387
  %439 = vmatpush.msra.mxu0 %v386
  %440 = vmatpush.msra.mxu0 %v385
  %441 = vmatmul.f32.gmra.mxu0 %v402
  %v442 = vpop.f32.mrf.mxu0
  %v443 = vadd.f32 %v399, %v442
  %444 = vmatmul.f32.gmra.mxu0 %v405
  %v445 = vpop.f32.mrf.mxu0
  %v446 = vadd.f32 %v399, %v445
  %447 = vmatmul.f32.gmra.mxu0 %v408
  %v448 = vpop.f32.mrf.mxu0
  %v449 = vadd.f32 %v399, %v448
  %450 = vmatmul.f32.gmra.mxu0 %v411
  %v451 = vpop.f32.mrf.mxu0
  %v452 = vadd.f32 %v399, %v451
  %453 = vmatmul.f32.gmra.mxu0 %v414
  %v454 = vpop.f32.mrf.mxu0
  %v455 = vadd.f32 %v399, %v454
  %456 = vmatmul.f32.gmra.mxu0 %v417
  %v457 = vpop.f32.mrf.mxu0
  %v458 = vadd.f32 %v399, %v457
  %459 = vmatmul.f32.gmra.mxu0 %v420
  %v460 = vpop.f32.mrf.mxu0
  %v461 = vadd.f32 %v399, %v460
  %462 = vmatmul.f32.gmra.mxu0 %v423
  %v463 = vpop.f32.mrf.mxu0
  %v464 = vadd.f32 %v399, %v463
  %465 = vdwg.mxu0
  %v466 = vmax.f32 %v443, 0.0
  %v467 = vmax.f32 %v446, 0.0
  %v468 = vmax.f32 %v449, 0.0
  %v469 = vmax.f32 %v452, 0.0
  %v470 = vmax.f32 %v455, 0.0
  %v471 = vmax.f32 %v458, 0.0
  %v472 = vmax.f32 %v461, 0.0
  %v473 = vmax.f32 %v464, 0.0
  %v474 = vld [vmem:[%s16] sm:$0xff]
  %v475 = vld [vmem:[%s16 + $0x8] sm:$0xff]
  %v476 = vld [vmem:[%s16 + $0x10] sm:$0xff]
  %v477 = vld [vmem:[%s16 + $0x18] sm:$0xff]
  %v478 = vld [vmem:[%s16 + $0x20] sm:$0xff]
  %v479 = vld [vmem:[%s16 + $0x28] sm:$0xff]
  %v480 = vld [vmem:[%s16 + $0x30] sm:$0xff]
  %v481 = vld [vmem:[%s16 + $0x38] sm:$0xff]
  %v482 = vld [vmem:[%s16 + $0x40] sm:$0xff]
  %v483 = vld [vmem:[%s16 + $0x48] sm:$0xff]
  %v484 = vld [vmem:[%s16 + $0x50] sm:$0xff]
  %v485 = vld [vmem:[%s16 + $0x58] sm:$0xff]
  %v486 = vld [vmem:[%s16 + $0x60] sm:$0xff]
  %v487 = vld [vmem:[%s16 + $0x68] sm:$0xff]
  %v488 = vld [vmem:[%s16 + $0x70] sm:$0xff]
  %v489 = vld [vmem:[%s16 + $0x78] sm:$0xff]
  %v490 = vld [vmem:[%s17] sm:$0x1]
  %v492 = vperm.slane %v490, 0
  %494 = vmatpush.msra.mxu0 %v489
  %495 = vmatpush.msra.mxu0 %v488
  %496 = vmatpush.msra.mxu0 %v487
  %497 = vmatpush.msra.mxu0 %v486
  %498 = vmatpush.msra.mxu0 %v485
  %499 = vmatpush.msra.mxu0 %v484
  %500 = vmatpush.msra.mxu0 %v483
  %501 = vmatpush.msra.mxu0 %v482
  %502 = vmatpush.msra.mxu0 %v481
  %503 = vmatpush.msra.mxu0 %v480
  %504 = vmatpush.msra.mxu0 %v479
  %505 = vmatpush.msra.mxu0 %v478
  %506 = vmatpush.msra.mxu0 %v477
  %507 = vmatpush.msra.mxu0 %v476
  %508 = vmatpush.msra.mxu0 %v475
  %509 = vmatpush.msra.mxu0 %v474
  %510 = vmatmul.f32.gmra.mxu0 %v466
  %v511 = vpop.f32.mrf.mxu0
  %v512 = vadd.f32 %v492, %v511
  %513 = vmatmul.f32.gmra.mxu0 %v467
  %v514 = vpop.f32.mrf.mxu0
  %v515 = vadd.f32 %v492, %v514
  %516 = vmatmul.f32.gmra.mxu0 %v468
  %v517 = vpop.f32.mrf.mxu0
  %v518 = vadd.f32 %v492, %v517
  %519 = vmatmul.f32.gmra.mxu0 %v469
  %v520 = vpop.f32.mrf.mxu0
  %v521 = vadd.f32 %v492, %v520
  %522 = vmatmul.f32.gmra.mxu0 %v470
  %v523 = vpop.f32.mrf.mxu0
  %v524 = vadd.f32 %v492, %v523
  %525 = vmatmul.f32.gmra.mxu0 %v471
  %v526 = vpop.f32.mrf.mxu0
  %v527 = vadd.f32 %v492, %v526
  %528 = vmatmul.f32.gmra.mxu0 %v472
  %v529 = vpop.f32.mrf.mxu0
  %v530 = vadd.f32 %v492, %v529
  %531 = vmatmul.f32.gmra.mxu0 %v473
  %v532 = vpop.f32.mrf.mxu0
  %v533 = vadd.f32 %v492, %v532
  %534 = vdwg.mxu0
  %v536 = vrot.slane %v209, 1
  %v537 = vrot.slane %v209, 2
  %v538 = vrot.slane %v209, 3
  %v539 = vrot.slane %v209, 4
  %v540 = vrot.slane %v209, 5
  %v541 = vrot.slane %v209, 6
  %v542 = vrot.slane %v209, 7
  %v543 = vsel %vm68, %v209, 0
  %v546 = vsel %vm68, %v512, 0
  %548 = vmatpush.xpose.msra.mxu0 0.0
  %549 = vmatpush.xpose.msra.mxu0 0.0
  %550 = vmatpush.xpose.msra.mxu0 0.0
  %551 = vmatpush.xpose.msra.mxu0 0.0
  %552 = vmatpush.xpose.msra.mxu0 0.0
  %553 = vmatpush.xpose.msra.mxu0 0.0
  %554 = vmatpush.xpose.msra.mxu0 0.0
  %555 = vmatpush.xpose.msra.mxu0 0.0
  %556 = vmatpush.xpose.msra.mxu0 0.0
  %557 = vmatpush.xpose.msra.mxu0 0.0
  %558 = vmatpush.xpose.msra.mxu0 0.0
  %559 = vmatpush.xpose.msra.mxu0 0.0
  %560 = vmatpush.xpose.msra.mxu0 0.0
  %561 = vmatpush.xpose.msra.mxu0 0.0
  %562 = vmatpush.xpose.msra.mxu0 0.0
  %563 = vmatpush.xpose.msra.mxu0 %v546
  %564 = vmatmul.f32.gmra.mxu0 %v543
  %v565 = vpop.f32.mrf.mxu0
  %v566 = vadd.f32 0.0, %v565
  %567 = vdwg.mxu0
  %v568 = vsel %vm68, %v536, 0
  %v571 = vsel %vm68, %v515, 0
  %573 = vmatpush.xpose.msra.mxu0 0.0
  %574 = vmatpush.xpose.msra.mxu0 0.0
  %575 = vmatpush.xpose.msra.mxu0 0.0
  %576 = vmatpush.xpose.msra.mxu0 0.0
  %577 = vmatpush.xpose.msra.mxu0 0.0
  %578 = vmatpush.xpose.msra.mxu0 0.0
  %579 = vmatpush.xpose.msra.mxu0 0.0
  %580 = vmatpush.xpose.msra.mxu0 0.0
  %581 = vmatpush.xpose.msra.mxu0 0.0
  %582 = vmatpush.xpose.msra.mxu0 0.0
  %583 = vmatpush.xpose.msra.mxu0 0.0
  %584 = vmatpush.xpose.msra.mxu0 0.0
  %585 = vmatpush.xpose.msra.mxu0 0.0
  %586 = vmatpush.xpose.msra.mxu0 0.0
  %587 = vmatpush.xpose.msra.mxu0 0.0
  %588 = vmatpush.xpose.msra.mxu0 %v571
  %589 = vmatmul.f32.gmra.mxu0 %v568
  %v590 = vpop.f32.mrf.mxu0
  %v591 = vadd.f32 0.0, %v590
  %592 = vdwg.mxu0
  %v593 = vsel %vm68, %v537, 0
  %v596 = vsel %vm68, %v518, 0
  %598 = vmatpush.xpose.msra.mxu0 0.0
  %599 = vmatpush.xpose.msra.mxu0 0.0
  %600 = vmatpush.xpose.msra.mxu0 0.0
  %601 = vmatpush.xpose.msra.mxu0 0.0
  %602 = vmatpush.xpose.msra.mxu0 0.0
  %603 = vmatpush.xpose.msra.mxu0 0.0
  %604 = vmatpush.xpose.msra.mxu0 0.0
  %605 = vmatpush.xpose.msra.mxu0 0.0
  %606 = vmatpush.xpose.msra.mxu0 0.0
  %607 = vmatpush.xpose.msra.mxu0 0.0
  %608 = vmatpush.xpose.msra.mxu0 0.0
  %609 = vmatpush.xpose.msra.mxu0 0.0
  %610 = vmatpush.xpose.msra.mxu0 0.0
  %611 = vmatpush.xpose.msra.mxu0 0.0
  %612 = vmatpush.xpose.msra.mxu0 0.0
  %613 = vmatpush.xpose.msra.mxu0 %v596
  %614 = vmatmul.f32.gmra.mxu0 %v593
  %v615 = vpop.f32.mrf.mxu0
  %v616 = vadd.f32 0.0, %v615
  %617 = vdwg.mxu0
  %v618 = vsel %vm68, %v538, 0
  %v621 = vsel %vm68, %v521, 0
  %623 = vmatpush.xpose.msra.mxu0 0.0
  %624 = vmatpush.xpose.msra.mxu0 0.0
  %625 = vmatpush.xpose.msra.mxu0 0.0
  %626 = vmatpush.xpose.msra.mxu0 0.0
  %627 = vmatpush.xpose.msra.mxu0 0.0
  %628 = vmatpush.xpose.msra.mxu0 0.0
  %629 = vmatpush.xpose.msra.mxu0 0.0
  %630 = vmatpush.xpose.msra.mxu0 0.0
  %631 = vmatpush.xpose.msra.mxu0 0.0
  %632 = vmatpush.xpose.msra.mxu0 0.0
  %633 = vmatpush.xpose.msra.mxu0 0.0
  %634 = vmatpush.xpose.msra.mxu0 0.0
  %635 = vmatpush.xpose.msra.mxu0 0.0
  %636 = vmatpush.xpose.msra.mxu0 0.0
  %637 = vmatpush.xpose.msra.mxu0 0.0
  %638 = vmatpush.xpose.msra.mxu0 %v621
  %639 = vmatmul.f32.gmra.mxu0 %v618
  %v640 = vpop.f32.mrf.mxu0
  %v641 = vadd.f32 0.0, %v640
  %642 = vdwg.mxu0
  %v643 = vsel %vm68, %v539, 0
  %v646 = vsel %vm68, %v524, 0
  %648 = vmatpush.xpose.msra.mxu0 0.0
  %649 = vmatpush.xpose.msra.mxu0 0.0
  %650 = vmatpush.xpose.msra.mxu0 0.0
  %651 = vmatpush.xpose.msra.mxu0 0.0
  %652 = vmatpush.xpose.msra.mxu0 0.0
  %653 = vmatpush.xpose.msra.mxu0 0.0
  %654 = vmatpush.xpose.msra.mxu0 0.0
  %655 = vmatpush.xpose.msra.mxu0 0.0
  %656 = vmatpush.xpose.msra.mxu0 0.0
  %657 = vmatpush.xpose.msra.mxu0 0.0
  %658 = vmatpush.xpose.msra.mxu0 0.0
  %659 = vmatpush.xpose.msra.mxu0 0.0
  %660 = vmatpush.xpose.msra.mxu0 0.0
  %661 = vmatpush.xpose.msra.mxu0 0.0
  %662 = vmatpush.xpose.msra.mxu0 0.0
  %663 = vmatpush.xpose.msra.mxu0 %v646
  %664 = vmatmul.f32.gmra.mxu0 %v643
  %v665 = vpop.f32.mrf.mxu0
  %v666 = vadd.f32 0.0, %v665
  %667 = vdwg.mxu0
  %v668 = vsel %vm68, %v540, 0
  %v671 = vsel %vm68, %v527, 0
  %673 = vmatpush.xpose.msra.mxu0 0.0
  %674 = vmatpush.xpose.msra.mxu0 0.0
  %675 = vmatpush.xpose.msra.mxu0 0.0
  %676 = vmatpush.xpose.msra.mxu0 0.0
  %677 = vmatpush.xpose.msra.mxu0 0.0
  %678 = vmatpush.xpose.msra.mxu0 0.0
  %679 = vmatpush.xpose.msra.mxu0 0.0
  %680 = vmatpush.xpose.msra.mxu0 0.0
  %681 = vmatpush.xpose.msra.mxu0 0.0
  %682 = vmatpush.xpose.msra.mxu0 0.0
  %683 = vmatpush.xpose.msra.mxu0 0.0
  %684 = vmatpush.xpose.msra.mxu0 0.0
  %685 = vmatpush.xpose.msra.mxu0 0.0
  %686 = vmatpush.xpose.msra.mxu0 0.0
  %687 = vmatpush.xpose.msra.mxu0 0.0
  %688 = vmatpush.xpose.msra.mxu0 %v671
  %689 = vmatmul.f32.gmra.mxu0 %v668
  %v690 = vpop.f32.mrf.mxu0
  %v691 = vadd.f32 0.0, %v690
  %692 = vdwg.mxu0
  %v693 = vsel %vm68, %v541, 0
  %v696 = vsel %vm68, %v530, 0
  %698 = vmatpush.xpose.msra.mxu0 0.0
  %699 = vmatpush.xpose.msra.mxu0 0.0
  %700 = vmatpush.xpose.msra.mxu0 0.0
  %701 = vmatpush.xpose.msra.mxu0 0.0
  %702 = vmatpush.xpose.msra.mxu0 0.0
  %703 = vmatpush.xpose.msra.mxu0 0.0
  %704 = vmatpush.xpose.msra.mxu0 0.0
  %705 = vmatpush.xpose.msra.mxu0 0.0
  %706 = vmatpush.xpose.msra.mxu0 0.0
  %707 = vmatpush.xpose.msra.mxu0 0.0
  %708 = vmatpush.xpose.msra.mxu0 0.0
  %709 = vmatpush.xpose.msra.mxu0 0.0
  %710 = vmatpush.xpose.msra.mxu0 0.0
  %711 = vmatpush.xpose.msra.mxu0 0.0
  %712 = vmatpush.xpose.msra.mxu0 0.0
  %713 = vmatpush.xpose.msra.mxu0 %v696
  %714 = vmatmul.f32.gmra.mxu0 %v693
  %v715 = vpop.f32.mrf.mxu0
  %v716 = vadd.f32 0.0, %v715
  %717 = vdwg.mxu0
  %v718 = vsel %vm68, %v542, 0
  %v721 = vsel %vm68, %v533, 0
  %723 = vmatpush.xpose.msra.mxu0 0.0
  %724 = vmatpush.xpose.msra.mxu0 0.0
  %725 = vmatpush.xpose.msra.mxu0 0.0
  %726 = vmatpush.xpose.msra.mxu0 0.0
  %727 = vmatpush.xpose.msra.mxu0 0.0
  %728 = vmatpush.xpose.msra.mxu0 0.0
  %729 = vmatpush.xpose.msra.mxu0 0.0
  %730 = vmatpush.xpose.msra.mxu0 0.0
  %731 = vmatpush.xpose.msra.mxu0 0.0
  %732 = vmatpush.xpose.msra.mxu0 0.0
  %733 = vmatpush.xpose.msra.mxu0 0.0
  %734 = vmatpush.xpose.msra.mxu0 0.0
  %735 = vmatpush.xpose.msra.mxu0 0.0
  %736 = vmatpush.xpose.msra.mxu0 0.0
  %737 = vmatpush.xpose.msra.mxu0 0.0
  %738 = vmatpush.xpose.msra.mxu0 %v721
  %739 = vmatmul.f32.gmra.mxu0 %v718
  %v740 = vpop.f32.mrf.mxu0
  %v741 = vadd.f32 0.0, %v740
  %742 = vdwg.mxu0
  %v751 = vrot.slane %v591, 7
  %vm752 = vcmask 1041409
  %v753 = vsel %vm752, %v751, %v566
  %v754 = vrot.slane %v616, 6
  %vm755 = vcmask 1042434
  %v756 = vsel %vm755, %v754, %v753
  %v757 = vrot.slane %v641, 5
  %vm758 = vcmask 1043459
  %v759 = vsel %vm758, %v757, %v756
  %v760 = vrot.slane %v666, 4
  %vm761 = vcmask 1044484
  %v762 = vsel %vm761, %v760, %v759
  %v763 = vrot.slane %v691, 3
  %vm764 = vcmask 1045509
  %v765 = vsel %vm764, %v763, %v762
  %v766 = vrot.slane %v716, 2
  %vm767 = vcmask 1046534
  %v768 = vsel %vm767, %v766, %v765
  %v769 = vrot.slane %v741, 1
  %vm770 = vcmask 1047559
  %v771 = vsel %vm770, %v769, %v768
  %vm773 = vcmask 64512
  %774 = vst.msk [vmem:[%s18] sm:$0xff] %vm773, %v771
  // Predicated region
  $region74: #{two_tower_forward.1} parent=0 // pred_check
    _
  $region75: #{two_tower_forward.1} parent=0 // pred_check_branch
    %776 = sbr.rel (0) target = $region77
  $region76: #{two_tower_forward.1} parent=0 // pred_region
    _
  $region77: #{two_tower_forward.1} parent=0 // pred_fallthru
    _
  // Predicated region
  $region78: #{two_tower_forward.1} parent=0 // pred_check
    _
  $region79: #{two_tower_forward.1} parent=0 // pred_check_branch
    %778 = sbr.rel (0) target = $region81
  $region80: #{two_tower_forward.1} parent=0 // pred_region
    _
  $region81: #{two_tower_forward.1} parent=0 // pred_fallthru
    _

</llo_original>
